<compile_context>
chip_gen: v7x
topology: tpu7x:2x2x1
jax: 0.10.0
libtpu: 0.0.40
codegen_flags: <defaults>
</compile_context>

<pallas_src>
import functools

import jax
import jax.numpy as jnp
from jax.experimental import pallas as pl
from jax.experimental.pallas import tpu as pltpu

DEFAULT_BLOCK_TOKENS = 256  # tokens gathered per grid step (main perf lever)


def _round_up(n: int, m: int) -> int:
    return ((n + m - 1) // m) * m


def _embed_kernel(seed_ref, *refs, stddev: float, noise_mode: str):
    """Gather TB embedding rows via one-hot MXU matmul, optionally add noise.

    refs layout:
      noise_mode in ("none","prng"): idx_ref (TB,1) i32 | emb_ref (V,D) | o_ref (TB,D)
      noise_mode == "hbm"          : idx_ref | emb_ref | noise_ref (TB,D) f32 | o_ref
    """
    if noise_mode == "hbm":
        idx_ref, emb_ref, noise_ref, o_ref = refs
    else:
        idx_ref, emb_ref, o_ref = refs
        noise_ref = None

    ids = idx_ref[...]                       # (TB, 1) int32
    tb = ids.shape[0]
    vocab = emb_ref.shape[0]

    # One-hot gather: (TB, V) x (V, D) on the MXU.  Exact for 0/1 weights.
    col = jax.lax.broadcasted_iota(jnp.int32, (tb, vocab), dimension=1)
    onehot = (col == ids).astype(emb_ref.dtype)                    # (TB, V)
    gathered = jnp.dot(onehot, emb_ref[...],
                       preferred_element_type=jnp.float32)         # (TB, D) f32

    if noise_mode == "prng":
        # In-kernel Gaussian noise: no HBM noise stream.  Per-step seed keeps
        # streams distinct and megacore-safe; noise is fused before the single
        # store (no read-modify-write of the output tile).
        pltpu.prng_seed(seed_ref[0] + pl.program_id(0))
        noise = pltpu.stateful_normal(gathered.shape, jnp.float32)
        gathered = gathered + noise * stddev
    elif noise_mode == "hbm":
        gathered = gathered + noise_ref[...].astype(jnp.float32) * stddev

    o_ref[...] = gathered.astype(o_ref.dtype)


def _make_call(*, n_pad, tb, V, D, out_dtype, stddev, noise_mode, vmem_limit):
    # All index_maps take (grid_i, seed_ref): seed is a scalar-prefetch operand.
    in_specs = [
        pl.BlockSpec((tb, 1), lambda i, seed: (i, 0)),
        pl.BlockSpec((V, D), lambda i, seed: (0, 0)),   # table resident in VMEM
    ]
    if noise_mode == "hbm":
        in_specs.append(pl.BlockSpec((tb, D), lambda i, seed: (i, 0)))

    kernel = functools.partial(
        _embed_kernel, stddev=float(stddev), noise_mode=noise_mode
    )
    return pl.pallas_call(
        kernel,
        out_shape=jax.ShapeDtypeStruct((n_pad, D), out_dtype),
        grid_spec=pltpu.PrefetchScalarGridSpec(
            num_scalar_prefetch=1,
            grid=(n_pad // tb,),
            in_specs=in_specs,
            out_specs=pl.BlockSpec((tb, D), lambda i, seed: (i, 0)),
        ),
        compiler_params=pltpu.CompilerParams(
            dimension_semantics=("parallel",),   # disjoint output tiles
            vmem_limit_bytes=vmem_limit,
        ),
    )


def regularized_embedding(x, emb_table, *, stddev, training, rng_key=None,
                          block_tokens=DEFAULT_BLOCK_TOKENS):
    """JAX wrapper mirroring RegularizedEmbedding.forward."""
    B, S = x.shape
    V, D = emb_table.shape
    N = B * S
    add_noise = bool(training) and float(stddev) != 0.0

    # Token tile height: large when possible, clamped and sublane-aligned
    # (multiple of 16 also satisfies bf16 packed (16,128) tiles).
    tb = min(int(block_tokens), _round_up(N, 16))
    n_pad = _round_up(N, tb)

    idx = x.reshape(N).astype(jnp.int32)
    if n_pad != N:
        idx = jnp.pad(idx, (0, n_pad - N))
    idx2d = idx.reshape(n_pad, 1)            # (N_pad, 1): ids broadcast along lanes

    # VMEM budget: resident table (double-buffered allocation) + output/noise/idx
    # tiles + headroom; capped at 64 MiB so it also fits v7x.
    elem = jnp.dtype(emb_table.dtype).itemsize
    need = (V * D * elem) * 2 + 6 * tb * D * 4 + 4 * tb * 4 + (2 << 20)
    vmem_limit = int(min(max(need, 16 << 20), 64 << 20))

    common = dict(n_pad=n_pad, tb=tb, V=V, D=D, out_dtype=emb_table.dtype,
                  stddev=stddev, vmem_limit=vmem_limit)

    if not add_noise:
        seed = jnp.zeros((1,), jnp.int32)    # unused in eval mode
        out = _make_call(noise_mode="none", **common)(seed, idx2d, emb_table)
    else:
        if rng_key is None:
            rng_key = jax.random.PRNGKey(0)
        k_seed, k_noise = jax.random.split(rng_key)
        seed = jax.random.randint(k_seed, (1,), 0, jnp.iinfo(jnp.int32).max,
                                  dtype=jnp.int32)
        try:
            # Preferred path: hardware-PRNG noise generated inside the kernel.
            out = _make_call(noise_mode="prng", **common)(seed, idx2d, emb_table)
        except Exception:
            # Fallback for stacks without pltpu.stateful_normal lowering: stream
            # unit normals from HBM and scale/add in-kernel (same semantics).
            noise = jax.random.normal(k_noise, (n_pad, D), dtype=jnp.float32)
            out = _make_call(noise_mode="hbm", **common)(seed, idx2d, emb_table,
                                                         noise)

    return out[:N].reshape(B, S, D)


if __name__ == "__main__":
    key = jax.random.PRNGKey(0)
    k_emb, k_idx, k_noise = jax.random.split(key, 3)

    # Module hyperparameters (small, consistent with the forward pass).
    num_embeddings = 64    # V
    embedding_dim = 128    # D
    stddev = 0.5
    B, S = 2, 8

    # nn.Embedding default init: weight ~ N(0, 1). Deterministic via PRNGKey(0).
    emb_table = jax.random.normal(
        k_emb, (num_embeddings, embedding_dim), dtype=jnp.float32
    )
    x = jax.random.randint(k_idx, (B, S), 0, num_embeddings, dtype=jnp.int32)

    ref = jnp.take(emb_table, x, axis=0)

    # --- eval mode (training=False): pure embedding lookup ---
    out_eval = regularized_embedding(x, emb_table, stddev=stddev, training=False)
    out_eval = jax.block_until_ready(out_eval)
    assert out_eval.shape == (B, S, embedding_dim)
    assert jnp.allclose(out_eval, ref, atol=1e-6), "eval-mode gather mismatch"

    # --- training mode: lookup + additive Gaussian noise (std = stddev) ---
    out_train = regularized_embedding(
        x, emb_table, stddev=stddev, training=True, rng_key=k_noise
    )
    out_train = jax.block_until_ready(out_train)
    assert out_train.shape == (B, S, embedding_dim)
    assert bool(jnp.all(jnp.isfinite(out_train)))
    assert not bool(jnp.allclose(out_train, ref)), "noise was not applied"
    diff = out_train - out_eval
    emp_std = float(jnp.std(diff))
    emp_mean = float(jnp.mean(diff))
    assert abs(emp_std - stddev) < 0.15, f"noise std off: {emp_std}"
    assert abs(emp_mean) < 0.1, f"noise mean off: {emp_mean}"

    print("KERNEL_OK")
</pallas_src>

<mosaic_0001>
module attributes {stable_mosaic.version = 11 : i64} {
  func.func @_embed_kernel(%arg0: i32, %arg1: memref<1xi32, #tpu.memory_space<smem>>, %arg2: memref<16x1xi32, #tpu.memory_space<vmem>>, %arg3: memref<64x128xf32, #tpu.memory_space<vmem>>, %arg4: memref<16x128xf32, #tpu.memory_space<vmem>>) attributes {dimension_semantics = [#tpu.dimension_semantics<parallel>], iteration_bounds = array<i64: 1>, scalar_prefetch = 1 : i64, scratch_operands = 0 : i64, tpu.core_type = #tpu.core_type<tc>, window_params = [{transform_indices = @transform_0, window_bounds = array<i64: 16, 1>}, {pipeline_mode = #tpu.pipeline_mode<synchronous>, transform_indices = @transform_1, window_bounds = array<i64: 64, 128>}, {transform_indices = @transform_2, window_bounds = array<i64: 16, 128>}]} {
    %c0 = arith.constant 0 : index
    %c0_0 = arith.constant 0 : index
    %0 = vector.load %arg2[%c0, %c0_0] : memref<16x1xi32, #tpu.memory_space<vmem>>, vector<16x1xi32>
    %1 = tpu.iota {dimensions = array<i32: 1>} : vector<16x64xi32>
    %2 = vector.broadcast %0 : vector<16x1xi32> to vector<16x64xi32>
    %3 = arith.cmpi eq, %1, %2 : vector<16x64xi32>
    %4 = arith.extui %3 : vector<16x64xi1> to vector<16x64xi32>
    %5 = arith.sitofp %4 : vector<16x64xi32> to vector<16x64xf32>
    %c0_1 = arith.constant 0 : index
    %c0_2 = arith.constant 0 : index
    %6 = vector.load %arg3[%c0_1, %c0_2] : memref<64x128xf32, #tpu.memory_space<vmem>>, vector<64x128xf32>
    %cst = arith.constant dense<0.000000e+00> : vector<16x128xf32>
    %7 = tpu.matmul %5, %6, %cst {dimension_numbers = #tpu.dot_dimension_numbers<[1], [0], [0], [1], [0, 0, 1, 1], [], []>} : vector<16x64xf32>, vector<64x128xf32>, vector<16x128xf32> -> vector<16x128xf32>
    %c0_3 = arith.constant 0 : index
    %c0_4 = arith.constant 0 : index
    %8 = vector.load %arg4[%c0_3, %c0_4] : memref<16x128xf32, #tpu.memory_space<vmem>>, vector<16x128xf32>
    tpu.vector_store %arg4[%c0_3, %c0_4], %7 {strides = array<i32>} : memref<16x128xf32, #tpu.memory_space<vmem>>, vector<16x128xf32>,
    return
  }
  func.func @transform_0(%arg0: i32, %arg1: memref<1xi32, #tpu.memory_space<smem>>) -> (i32, i32) {
    %c0_i32 = arith.constant 0 : i32
    %c0_i32_0 = arith.constant 0 : i32
    return %arg0, %c0_i32 : i32, i32
  }
  func.func @transform_1(%arg0: i32, %arg1: memref<1xi32, #tpu.memory_space<smem>>) -> (i32, i32) {
    %c0_i32 = arith.constant 0 : i32
    %c0_i32_0 = arith.constant 0 : i32
    %c0_i32_1 = arith.constant 0 : i32
    return %c0_i32, %c0_i32_0 : i32, i32
  }
  func.func @transform_2(%arg0: i32, %arg1: memref<1xi32, #tpu.memory_space<smem>>) -> (i32, i32) {
    %c0_i32 = arith.constant 0 : i32
    %c0_i32_0 = arith.constant 0 : i32
    return %arg0, %c0_i32 : i32, i32
  }
}

</mosaic_0001>

<llo_original>
// kernel: tpu_custom_call.1
$region0: #{tpu_custom_call.1}
  #allocation0 [shape = 'u32[]', space=smem, size = 0x4, offset = 0x4, fixed_abs, tag = 'smem constant byte address 0x4 - core index']
  #allocation1 [shape = 'u32[144,128]{1,0:T(1,128)}', space=vmem, size = 0x12000, scoped, tag = 'internal scratch']
  #allocation2 [shape = 's32[1]{0}', space=sflag, size = 0x4, scoped, tag = 'scoped memory for tpu_custom_call.1']
  #allocation3 [shape = 's32[1]{0:T(128)S(6)}', space=smem, size = 0x200, scoped, tag = 'prefetched SMEM operand 0']
  %s0 = inlined_call_operand.<no memory space> [shape: s32[1], index: 0, kind: input, shape index: {}]
  %s1 = inlined_call_operand.vmem [shape: s32[16,1], index: 1, kind: input, shape index: {}]
  %s2 = inlined_call_operand.hbm [shape: f32[64,128], index: 2, kind: input, shape index: {}]
  %s3 = inlined_call_operand.hbm [shape: f32[16,128], index: 3, kind: output, shape index: {}]
  %s4 = sld [smem:[#allocation0]]
  $region22: #{tpu_custom_call.1} parent=0
    _
  %s6 = ssub.s32 1, %s4
  %s7 = scalar_select 0, %s6, %s4
  %8 = sst [smem:[#allocation3]] %s0
  $region1: #{tpu_custom_call.1} parent=0
    #allocation4 [shape = 'u8[32768]{0}', space=vmem, size = 0x8000, scoped, tag = 'input window, operand 2, single buffered']
    #allocation5 [shape = 's32[1]{0}', space=sflag, size = 0x4, scoped, tag = 'scoped memory for tpu_custom_call.1']
    #allocation6 [shape = 's32[1]{0}', space=sflag, size = 0x4, scoped, tag = 'scoped memory for tpu_custom_call.1']
    #allocation7 [shape = 'u8[8192]{0}', space=vmem, size = 0x2000, scoped, tag = 'output window, operand 0, single buffered']
    %9 = vsyncpa [#allocation5], 0
    %10 = vsyncpa [#allocation6], 0
    // Predicated region
    $region2: #{tpu_custom_call.1} parent=1 // pred_check
      _
    $region3: #{tpu_custom_call.1} parent=1 // pred_check_branch
      %12 = sbr.rel (0) target = $region5
    $region4: #{tpu_custom_call.1} parent=1 // pred_region
      _
    $region5: #{tpu_custom_call.1} parent=1 // pred_fallthru
      _
    // Predicated region
    $region6: #{tpu_custom_call.1} parent=1 // pred_check
      _
    $region7: #{tpu_custom_call.1} parent=1 // pred_check_branch
      %14 = sbr.rel (0) target = $region9
    $region8: #{tpu_custom_call.1} parent=1 // pred_region
      %s16 = ssub.s32 1024, 1024
      %17 = vsyncadd [#allocation5], %s16
      %s18 = sshll.u32 [#allocation4], 4
      %s19 = int_to_ptr.vmem [resolvable:$true] %s18
      %24 = dma.hbm_to_vmem [thread:$0]  %s2, 1024, %s19, [#allocation5], 128, 128, 8
    $region9: #{tpu_custom_call.1} parent=1 // pred_fallthru
      _
    // Predicated region
    $region10: #{tpu_custom_call.1} parent=1 // pred_check
      _
    $region11: #{tpu_custom_call.1} parent=1 // pred_check_branch
      %26 = sbr.rel (0) target = $region13
    $region12: #{tpu_custom_call.1} parent=1 // pred_region
      %27 = dma.done [#allocation5], 1024
    $region13: #{tpu_custom_call.1} parent=1 // pred_fallthru
      _
    %v28 = vld [vmem:[%s1] sm:$0xff]
    %v29 = vld [vmem:[%s1 + $0x8] sm:$0xff]
    %v30 = vlaneseq
    %v31 = vand.u32 %v30, 127
    %32 = vset.pattern.permute.xlu0 0
    %33 = vperm.xlu0 %32, %v28
    %v34 = vpop.permute.xlu0 %33
    %35 = vset.pattern.permute.xlu0 0
    %36 = vperm.xlu0 %35, %v29
    %v37 = vpop.permute.xlu0 %36
    %vm38 = vcmp.eq.s32.totalorder %v31, %v34
    %vm39 = vcmp.eq.s32.totalorder %v31, %v37
    %v40 = vsel %vm38, 1, 0
    %v41 = vsel %vm39, 1, 0
    %v42 = vcvt.s32.f32 %v40
    %v43 = vcvt.s32.f32 %v41
    %v44 = vld [vmem:[#allocation4] sm:$0xff]
    %v45 = vld [vmem:[#allocation4 + $0x8] sm:$0xff]
    %v46 = vld [vmem:[#allocation4 + $0x10] sm:$0xff]
    %v47 = vld [vmem:[#allocation4 + $0x18] sm:$0xff]
    %v48 = vld [vmem:[#allocation4 + $0x20] sm:$0xff]
    %v49 = vld [vmem:[#allocation4 + $0x28] sm:$0xff]
    %v50 = vld [vmem:[#allocation4 + $0x30] sm:$0xff]
    %v51 = vld [vmem:[#allocation4 + $0x38] sm:$0xff]
    %vm52 = vcmask 523264
    %v54 = vsel %vm52, %v42, 0
    %v57 = vsel %vm52, %v43, 0
    %59 = vmatprep.subr.mxu0 0.0
    %60 = vmatpush1.msra.mxu0 %v44
    %61 = vmatprep.subr.mxu0 0.0
    %62 = vmatpush1.msra.mxu0 %v45
    %63 = vmatprep.subr.mxu0 0.0
    %64 = vmatpush1.msra.mxu0 %v46
    %65 = vmatprep.subr.mxu0 0.0
    %66 = vmatpush1.msra.mxu0 %v47
    %67 = vmatprep.subr.mxu0 0.0
    %68 = vmatpush1.msra.mxu0 %v48
    %69 = vmatprep.subr.mxu0 0.0
    %70 = vmatpush1.msra.mxu0 %v49
    %71 = vmatprep.subr.mxu0 0.0
    %72 = vmatpush1.msra.mxu0 %v50
    %73 = vmatprep.subr.mxu0 0.0
    %74 = vmatpush1.msra.mxu0 %v51
    %75 = vmatprep.subr.mxu0 0.0
    %76 = vmatpush1.msra.mxu0 0.0
    %77 = vmatprep.subr.mxu0 0.0
    %78 = vmatpush1.msra.mxu0 0.0
    %79 = vmatprep.subr.mxu0 0.0
    %80 = vmatpush1.msra.mxu0 0.0
    %81 = vmatprep.subr.mxu0 0.0
    %82 = vmatpush1.msra.mxu0 0.0
    %83 = vmatprep.subr.mxu0 0.0
    %84 = vmatpush1.msra.mxu0 0.0
    %85 = vmatprep.subr.mxu0 0.0
    %86 = vmatpush1.msra.mxu0 0.0
    %87 = vmatprep.subr.mxu0 0.0
    %88 = vmatpush1.msra.mxu0 0.0
    %89 = vmatprep.subr.mxu0 0.0
    %90 = vmatpush1.msra.mxu0 0.0
    %91 = vmatprep.subr.mxu0 0.0
    %92 = vmatpush1.msra.mxu0 0.0
    %93 = vmatprep.subr.mxu0 0.0
    %94 = vmatpush1.msra.mxu0 0.0
    %95 = vmatprep.subr.mxu0 0.0
    %96 = vmatpush1.msra.mxu0 0.0
    %97 = vmatprep.subr.mxu0 0.0
    %98 = vmatpush1.msra.mxu0 0.0
    %99 = vmatprep.subr.mxu0 0.0
    %100 = vmatpush1.msra.mxu0 0.0
    %101 = vmatprep.subr.mxu0 0.0
    %102 = vmatpush1.msra.mxu0 0.0
    %103 = vmatprep.subr.mxu0 0.0
    %104 = vmatpush1.msra.mxu0 0.0
    %105 = vmatprep.subr.mxu0 0.0
    %106 = vmatpush1.msra.mxu0 0.0
    %107 = vmatprep.subr.mxu0 0.0
    %108 = vmatpush1.msra.mxu0 0.0
    %109 = vmatprep.subr.mxu0 0.0
    %110 = vmatpush1.msra.mxu0 0.0
    %111 = vmatprep.subr.mxu0 0.0
    %112 = vmatpush1.msra.mxu0 0.0
    %113 = vmatprep.subr.mxu0 0.0
    %114 = vmatpush1.msra.mxu0 0.0
    %115 = vmatprep.subr.mxu0 0.0
    %116 = vmatpush1.msra.mxu0 0.0
    %117 = vmatprep.subr.mxu0 0.0
    %118 = vmatpush1.msra.mxu0 0.0
    %119 = vmatprep.subr.mxu0 0.0
    %120 = vmatpush1.msra.mxu0 0.0
    %121 = vmatprep.subr.mxu0 0.0
    %122 = vmatpush1.msra.mxu0 0.0
    %123 = vmatprep.mubr.f32.mxu0 0.0
    %124 = vmatmul.mubr.f32.gmra.mrb[0].mxu0 %v54
    %v125 = vpop.f32.mrb[0].mxu0
    %v126 = vadd.f32 0.0, %v125
    %v127 = vpop.f32.mrb[0].mxu0
    %128 = vmatprep.mubr.f32.mxu0 0.0
    %129 = vmatmul.mubr.f32.gmra.mrb[0].mxu0 %v57
    %v130 = vpop.f32.mrb[0].mxu0
    %v131 = vadd.f32 0.0, %v130
    %v132 = vpop.f32.mrb[0].mxu0
    %133 = vdwg.mxu0
    %134 = vst [vmem:[#allocation7] sm:$0xff] %v126
    %135 = vst [vmem:[#allocation7 + $0x8] sm:$0xff] %v131
    // Predicated region
    $region14: #{tpu_custom_call.1} parent=1 // pred_check
      _
    $region15: #{tpu_custom_call.1} parent=1 // pred_check_branch
      %137 = sbr.rel (0) target = $region17
    $region16: #{tpu_custom_call.1} parent=1 // pred_region
      %s139 = ssub.s32 256, 256
      %140 = vsyncadd [#allocation6], %s139
      %s141 = sshll.u32 [#allocation7], 4
      %s142 = int_to_ptr.vmem [resolvable:$true] %s141
      %147 = dma.vmem_to_hbm [thread:$0]  %s142, 256, %s3, [#allocation6], 128, 128, 8
    $region17: #{tpu_custom_call.1} parent=1 // pred_fallthru
      _
    // Predicated region
    $region18: #{tpu_custom_call.1} parent=1 // pred_check
      _
    $region19: #{tpu_custom_call.1} parent=1 // pred_check_branch
      %149 = sbr.rel (0) target = $region21
    $region20: #{tpu_custom_call.1} parent=1 // pred_region
      %150 = dma.done [#allocation6], 256
    $region21: #{tpu_custom_call.1} parent=1 // pred_fallthru
      _
    %151 = vsyncpa [#allocation5], 1
    %152 = vsyncpa [#allocation6], 1

</llo_original>
